<compile_context>
chip_gen: v6e
topology: v6e:2x2x1
jax: 0.10.0
libtpu: 0.0.40
codegen_flags: <defaults>
</compile_context>

<pallas_src>
import jax
import jax.numpy as jnp
from jax.experimental import pallas as pl
from jax.experimental.pallas import tpu as pltpu


def _relu_conv1x1_kernel(w_ref, x_ref, o_ref):
    # ReLU on the VPU, bf16 cast (VPU), single bf16 MXU matmul with f32 accum.
    # w_ref: (C_out, C_in), x_ref: (C_in, hw_blk), o_ref: (C_out, hw_blk)
    x = jnp.maximum(x_ref[...], 0.0).astype(jnp.bfloat16)
    w = w_ref[...].astype(jnp.bfloat16)
    o_ref[...] = jnp.dot(
        w, x, preferred_element_type=jnp.float32
    ).astype(o_ref.dtype)


def relu_conv1x1(x_nchw: jax.Array, weight_oihw: jax.Array) -> jax.Array:
    """ReLU followed by a bias-free 1x1 Conv2d, matching PyTorch semantics.

    x_nchw:      (N, C_in, H, W)
    weight_oihw: (C_out, C_in, 1, 1)   (PyTorch Conv2d weight layout)
    returns:     (N, C_out, H, W)
    """
    N, C_in, H, W = x_nchw.shape
    C_out = weight_oihw.shape[0]
    HW = H * W

    # Glue: reshapes only — no transposes, no HBM layout change.
    x_flat = x_nchw.reshape(N, C_in, HW)
    w = weight_oihw.reshape(C_out, C_in)

    # Shallow split of the HW (lane) axis. Block must be a multiple of 128 or
    # equal the full extent; 512 keeps the split to <=2 steps for HW=784.
    if HW > 512:
        hw_blk = 512
    else:
        hw_blk = HW
    hw_steps = pl.cdiv(HW, hw_blk)

    itemsize = jnp.dtype(x_flat.dtype).itemsize
    flops = 2 * N * C_out * C_in * HW
    bytes_accessed = (
        N * C_in * HW * itemsize        # x
        + C_out * C_in * itemsize       # w
        + N * C_out * HW * itemsize     # out
    )

    out_flat = pl.pallas_call(
        _relu_conv1x1_kernel,
        out_shape=jax.ShapeDtypeStruct((N, C_out, HW), x_flat.dtype),
        grid=(N, hw_steps),
        in_specs=[
            # Weight: single full block, resident across both grid axes.
            pl.BlockSpec((C_out, C_in), lambda n, h: (0, 0)),
            # Activations: one (batch, HW-block) tile per grid step.
            pl.BlockSpec((None, C_in, hw_blk), lambda n, h: (n, 0, h)),
        ],
        out_specs=pl.BlockSpec((None, C_out, hw_blk), lambda n, h: (n, 0, h)),
        compiler_params=pltpu.CompilerParams(
            dimension_semantics=("parallel", "parallel"),
        ),
        cost_estimate=pl.CostEstimate(
            flops=flops, transcendentals=0, bytes_accessed=bytes_accessed
        ),
    )(w, x_flat)

    # Glue: pure reshape back to NCHW.
    return out_flat.reshape(N, C_out, H, W)


if __name__ == "__main__":
    key = jax.random.PRNGKey(0)
    kx, kw = jax.random.split(key)

    # Shapes consistent with the PyTorch module:
    #   x46 = randn(1, 168, 28, 28); Conv2d(168, 168, kernel_size=1, bias=False)
    N, C, H, W = 1, 168, 28, 28
    x = jax.random.normal(kx, (N, C, H, W), dtype=jnp.float32)
    weight = jax.random.normal(kw, (C, C, 1, 1), dtype=jnp.float32) * 0.05

    out = relu_conv1x1(x, weight)
    out = jax.block_until_ready(out)

    # Sanity check against a plain-JAX f32 reference of the same math.
    # Tolerances loosened (bf16 matmul operands, f32 accumulation).
    ref = jnp.einsum(
        "nchw,oc->nohw", jnp.maximum(x, 0.0), weight[:, :, 0, 0]
    )
    assert out.shape == (N, C, H, W)
    assert jnp.allclose(out, ref, atol=3e-2, rtol=3e-2), (
        float(jnp.max(jnp.abs(out - ref)))
    )

    print("KERNEL_OK")
</pallas_src>

<mosaic_0001>
module attributes {stable_mosaic.version = 11 : i64} {
  func.func @_relu_conv1x1_kernel(%arg0: i32, %arg1: i32, %arg2: memref<168x168xf32, #tpu.memory_space<vmem>>, %arg3: memref<1x168x512xf32, #tpu.memory_space<vmem>>, %arg4: memref<1x168x512xf32, #tpu.memory_space<vmem>>) attributes {dimension_semantics = [#tpu.dimension_semantics<parallel>, #tpu.dimension_semantics<parallel>], iteration_bounds = array<i64: 1, 2>, scalar_prefetch = 0 : i64, scratch_operands = 0 : i64, tpu.core_type = #tpu.core_type<tc>, window_params = [{pipeline_mode = #tpu.pipeline_mode<synchronous>, transform_indices = @transform_0, window_bounds = array<i64: 168, 168>}, {transform_indices = @transform_1, window_bounds = array<i64: 1, 168, 512>}, {transform_indices = @transform_2, window_bounds = array<i64: 1, 168, 512>}]} {
    %c0 = arith.constant 0 : index
    %c0_0 = arith.constant 0 : index
    %c0_1 = arith.constant 0 : index
    %0 = vector.load %arg3[%c0, %c0_0, %c0_1] : memref<1x168x512xf32, #tpu.memory_space<vmem>>, vector<1x168x512xf32>
    %1 = vector.shape_cast %0 : vector<1x168x512xf32> to vector<168x512xf32>
    %cst = arith.constant 0.000000e+00 : f32
    %2 = vector.broadcast %cst : f32 to vector<168x512xf32>
    %3 = arith.maximumf %1, %2 : vector<168x512xf32>
    %4 = arith.truncf %3 : vector<168x512xf32> to vector<168x512xbf16>
    %c0_2 = arith.constant 0 : index
    %c0_3 = arith.constant 0 : index
    %5 = vector.load %arg2[%c0_2, %c0_3] : memref<168x168xf32, #tpu.memory_space<vmem>>, vector<168x168xf32>
    %6 = arith.truncf %5 : vector<168x168xf32> to vector<168x168xbf16>
    %cst_4 = arith.constant dense<0.000000e+00> : vector<168x512xf32>
    %7 = tpu.matmul %6, %4, %cst_4 {dimension_numbers = #tpu.dot_dimension_numbers<[1], [0], [0], [1], [0, 0, 1, 1], [], []>} : vector<168x168xbf16>, vector<168x512xbf16>, vector<168x512xf32> -> vector<168x512xf32>
    %c0_5 = arith.constant 0 : index
    %c0_6 = arith.constant 0 : index
    %c0_7 = arith.constant 0 : index
    %8 = vector.load %arg4[%c0_5, %c0_6, %c0_7] : memref<1x168x512xf32, #tpu.memory_space<vmem>>, vector<1x168x512xf32>
    %9 = vector.shape_cast %8 : vector<1x168x512xf32> to vector<168x512xf32>
    %10 = vector.shape_cast %7 : vector<168x512xf32> to vector<1x168x512xf32>
    tpu.vector_store %arg4[%c0_5, %c0_6, %c0_7], %10 {strides = array<i32>} : memref<1x168x512xf32, #tpu.memory_space<vmem>>, vector<1x168x512xf32>,
    return
  }
  func.func @transform_0(%arg0: i32, %arg1: i32) -> (i32, i32) {
    %c0_i32 = arith.constant 0 : i32
    %c0_i32_0 = arith.constant 0 : i32
    %c0_i32_1 = arith.constant 0 : i32
    return %c0_i32, %c0_i32_0 : i32, i32
  }
  func.func @transform_1(%arg0: i32, %arg1: i32) -> (i32, i32, i32) {
    %c0_i32 = arith.constant 0 : i32
    %c0_i32_0 = arith.constant 0 : i32
    return %arg0, %c0_i32, %arg1 : i32, i32, i32
  }
  func.func @transform_2(%arg0: i32, %arg1: i32) -> (i32, i32, i32) {
    %c0_i32 = arith.constant 0 : i32
    %c0_i32_0 = arith.constant 0 : i32
    return %arg0, %c0_i32, %arg1 : i32, i32, i32
  }
}

</mosaic_0001>

<llo_original>
// kernel: tpu_custom_call.1
$region0: #{tpu_custom_call.1}
  #allocation0 [shape = 'u32[]', space=smem, size = 0x4, offset = 0x4, fixed_abs, tag = 'smem constant byte address 0x4 - core index']
  #allocation1 [shape = 'u32[144,128]{1,0:T(1,128)}', space=vmem, size = 0x12000, scoped, tag = 'internal scratch']
  %s0 = inlined_call_operand.hbm [shape: f32[168,168], index: 0, kind: input, shape index: {}]
  %s1 = inlined_call_operand.hbm [shape: f32[1,168,784], index: 1, kind: input, shape index: {}]
  %s2 = inlined_call_operand.hbm [shape: f32[1,168,784], index: 2, kind: output, shape index: {}]
  %s3 = sld [smem:[#allocation0]]
  $region49: #{tpu_custom_call.1} parent=0
    _
  %s5 = ssub.s32 1, %s3
  %s6 = scalar_select 0, %s5, %s3
  $region1: #{tpu_custom_call.1} parent=0
    #allocation2 [shape = 'u8[172032]{0}', space=vmem, size = 0x2a000, scoped, tag = 'input window, operand 0, single buffered']
    #allocation3 [shape = 's32[2]{0}', space=sflag, size = 0x8, scoped, tag = 'scoped memory for tpu_custom_call.1']
    #allocation4 [shape = 's32[2]{0}', space=sflag, size = 0x8, scoped, tag = 'scoped memory for tpu_custom_call.1']
    #allocation5 [shape = 'u8[688128]{0}', space=vmem, size = 0xa8000, scoped, tag = 'input window, operand 1']
    #allocation6 [shape = 's32[2]{0}', space=sflag, size = 0x8, scoped, tag = 'scoped memory for tpu_custom_call.1']
    #allocation7 [shape = 'u8[688128]{0}', space=vmem, size = 0xa8000, scoped, tag = 'output window, operand 0']
    %7 = vsyncpa [#allocation3], 0
    %8 = vsyncpa [#allocation6], 0
    %s9 = scalar_lea.sflag [#allocation6], 1
    %10 = vsyncpa %s9, 0
    %11 = vsyncpa [#allocation4], 0
    %s12 = scalar_lea.sflag [#allocation4], 1
    %13 = vsyncpa %s12, 0
    loop: start=0, step=1, limit=4
    $region2: #{tpu_custom_call.1} parent=1 // loop_pre_header
      _
    $region3: #{tpu_custom_call.1} parent=1 // loop_header
      %s15 = sphi 0, %s19
      %p16 = scmp.ge.s32.totalorder %s15, 4
      %s22 = sphi 0, %s34
      %s23 = sphi 0, %s30
      %s24 = sphi 0, %s22
      %s25 = sphi 0, %s23
      %s26 = sphi 0, %s24
      %s27 = sphi 0, %s25
      %s35 = sphi 0, %s35
      %s37 = sphi 0, %s35
      %s38 = sphi 0, %s37
      %s52 = sphi 0, %s38
      %s60 = sphi 0, %s62
      %s63 = sphi 0, %s60
      %s64 = sphi 0, %s63
      %s80 = sphi 0, %s64
      %s88 = sphi 0, %s90
      %s91 = sphi 0, %s88
      %s92 = sphi 0, %s91
      %s108 = sphi 0, %s92
    $region4: #{tpu_custom_call.1} parent=1 // loop_header_branch
      %18 = sbr.rel (%p16) target = $region8
    $region5: #{tpu_custom_call.1} parent=1 // loop_body
      %s20 = ssub.s32 %s15, 1
      %s21 = ssub.s32 %s15, 2
      %s28 = sadd.s32 1, %s23
      %p29 = scmp.ge.s32.totalorder %s28, 2
      %s30 = scalar_select %p29, 0, %s28
      %s31 = sadd.s32 1, %s22
      %s32 = scalar_select %p29, %s31, %s22
      %p33 = scmp.ge.s32.totalorder %s32, 1
      %s34 = scalar_select %p33, 0, %s32
      %s36 = sadd.s32 %s35, 1
      %p39 = scmp.eq.s32.totalorder %s15, 1
      %p40 = scmp.ne.s32.totalorder %s35, %s37
      %p41 = scmp.eq.s32.totalorder %s15, 0
      %p42 = por %p40, %p41
      %p43 = scmp.ne.s32.totalorder %s35, %s37
      %p44 = scmp.eq.s32.totalorder %s20, 1
      %p45 = por %p43, %p44
      %p46 = scmp.ne.s32.totalorder %s37, %s38
      %p47 = scmp.eq.s32.totalorder %s20, 0
      %p48 = por %p46, %p47
      %p49 = scmp.ne.s32.totalorder %s37, %s38
      %p50 = scmp.eq.s32.totalorder %s21, 1
      %p51 = por %p49, %p50
      %p53 = scmp.ne.s32.totalorder %s38, %s52
      %p54 = scmp.eq.s32.totalorder %s21, 0
      %p55 = por %p53, %p54
      %s56 = ssub.s32 %s22, %s34
      %s57 = ssub.s32 %s23, %s30
      %s58 = sor.u32 %s56, %s57
      %p59 = scmp.eq.s32.totalorder %s58, 0
      %s61 = sadd.s32 %s60, 1
      %s62 = scalar_select %p59, %s60, %s61
      %p65 = pneg %p59
      %p66 = scmp.eq.s32.totalorder %s15, 1
      %p67 = por %p65, %p66
      %p68 = scmp.ne.s32.totalorder %s60, %s63
      %p69 = scmp.eq.s32.totalorder %s15, 0
      %p70 = por %p68, %p69
      %p71 = scmp.ne.s32.totalorder %s60, %s63
      %p72 = scmp.eq.s32.totalorder %s20, 1
      %p73 = por %p71, %p72
      %p74 = scmp.ne.s32.totalorder %s63, %s64
      %p75 = scmp.eq.s32.totalorder %s20, 0
      %p76 = por %p74, %p75
      %p77 = scmp.ne.s32.totalorder %s63, %s64
      %p78 = scmp.eq.s32.totalorder %s21, 1
      %p79 = por %p77, %p78
      %p81 = scmp.ne.s32.totalorder %s64, %s80
      %p82 = scmp.eq.s32.totalorder %s21, 0
      %p83 = por %p81, %p82
      %s84 = ssub.s32 %s22, %s34
      %s85 = ssub.s32 %s23, %s30
      %s86 = sor.u32 %s84, %s85
      %p87 = scmp.eq.s32.totalorder %s86, 0
      %s89 = sadd.s32 %s88, 1
      %s90 = scalar_select %p87, %s88, %s89
      %p93 = pneg %p87
      %p94 = scmp.eq.s32.totalorder %s15, 1
      %p95 = por %p93, %p94
      %p96 = scmp.ne.s32.totalorder %s88, %s91
      %p97 = scmp.eq.s32.totalorder %s15, 0
      %p98 = por %p96, %p97
      %p99 = scmp.ne.s32.totalorder %s88, %s91
      %p100 = scmp.eq.s32.totalorder %s20, 1
      %p101 = por %p99, %p100
      %p102 = scmp.ne.s32.totalorder %s91, %s92
      %p103 = scmp.eq.s32.totalorder %s20, 0
      %p104 = por %p102, %p103
      %p105 = scmp.ne.s32.totalorder %s91, %s92
      %p106 = scmp.eq.s32.totalorder %s21, 1
      %p107 = por %p105, %p106
      %p109 = scmp.ne.s32.totalorder %s92, %s108
      %p110 = scmp.eq.s32.totalorder %s21, 0
      %p111 = por %p109, %p110
      %p112 = scmp.le.s32.totalorder 1, %s15
      %p113 = scmp.lt.s32.totalorder %s15, 3
      %p114 = pnand %p112, %p113
      %p115 = pneg %p114
      // Predicated region
      $region9: #{tpu_custom_call.1} parent=5 // pred_check
        _
      $region10: #{tpu_custom_call.1} parent=5 // pred_check_branch
        %117 = sbr.rel (%p114) target = $region12
      $region11: #{tpu_custom_call.1} parent=5 // pred_region
        %s118 = ssub.s32 %s15, 1
        // Predicated region
        $region13: #{tpu_custom_call.1} parent=11 // pred_check
          %p119 = pneg %p48
        $region14: #{tpu_custom_call.1} parent=11 // pred_check_branch
          %121 = sbr.rel (%p119) target = $region16
        $region15: #{tpu_custom_call.1} parent=11 // pred_region
          %s123 = ssub.s32 5376, 5376
          %124 = vsyncadd [#allocation3], %s123
          %s125 = sshll.u32 [#allocation2], 4
          %s126 = int_to_ptr.vmem [resolvable:$true] %s125
          %131 = dma.hbm_to_vmem [thread:$0]  %s0, 5376, %s126, [#allocation3], 256, 256, 16
        $region16: #{tpu_custom_call.1} parent=11 // pred_fallthru
          _
      $region12: #{tpu_custom_call.1} parent=5 // pred_fallthru
        _
      %p132 = scmp.lt.s32.totalorder %s15, 2
      // Predicated region
      $region17: #{tpu_custom_call.1} parent=5 // pred_check
        %p133 = pneg %p132
      $region18: #{tpu_custom_call.1} parent=5 // pred_check_branch
        %135 = sbr.rel (%p133) target = $region20
      $region19: #{tpu_custom_call.1} parent=5 // pred_region
        // Predicated region
        $region21: #{tpu_custom_call.1} parent=19 // pred_check
          %p136 = pneg %p70
        $region22: #{tpu_custom_call.1} parent=19 // pred_check_branch
          %138 = sbr.rel (%p136) target = $region24
        $region23: #{tpu_custom_call.1} parent=19 // pred_region
          %s139 = sand.u32 %s60, 1
          %s140 = scalar_lea.sflag [#allocation6], %s139
          %s141 = sand.u32 %s60, 1
          %s142 = smul.addr %s141, 672
          %s143 = scalar_lea.vmem [#allocation5], %s142
          %s144 = smul.u32 4, %s23
          %s145 = ssub.s32 7, %s144
          %p146 = scmp.lt.s32.totalorder %s145, 4
          %s147 = scalar_select %p146, %s145, 4
          %s148 = smul.u32 2688, %s147
          %s150 = ssub.s32 10752, %s148
          %151 = vsyncadd %s140, %s150
          %p152 = scmp.ne.s32.totalorder 0, %s148
          %s153 = smul.addr %s22, 147
          %s154 = sadd.s32 %s144, %s153
          %s155 = smul.addr %s154, 128
          %s156 = scalar_lea.hbm %s1, %s155
          %s157 = smul.u32 %s147, 8
          %s158 = smul.u32 %s157, 21
          %s159 = sshll.u32 %s143, 4
          %s160 = int_to_ptr.vmem [resolvable:$true] %s159
          %s161 = sshll.u32 %s158, 4
          %165 = dma.hbm_to_vmem [thread:$0]  (%p152), %s156, %s161, %s160, %s140, 896, 512, %s157
        $region24: #{tpu_custom_call.1} parent=19 // pred_fallthru
          _
      $region20: #{tpu_custom_call.1} parent=5 // pred_fallthru
        _
      %p166 = scmp.le.s32.totalorder 1, %s15
      %p167 = scmp.lt.s32.totalorder %s15, 3
      %p168 = pnand %p166, %p167
      %p169 = pneg %p168
      // Predicated region
      $region25: #{tpu_custom_call.1} parent=5 // pred_check
        _
      $region26: #{tpu_custom_call.1} parent=5 // pred_check_branch
        %171 = sbr.rel (%p168) target = $region28
      $region27: #{tpu_custom_call.1} parent=5 // pred_region
        %s172 = ssub.s32 %s15, 1
        // Predicated region
        $region29: #{tpu_custom_call.1} parent=27 // pred_check
          %p173 = pneg %p48
        $region30: #{tpu_custom_call.1} parent=27 // pred_check_branch
          %175 = sbr.rel (%p173) target = $region32
        $region31: #{tpu_custom_call.1} parent=27 // pred_region
          %176 = dma.done [#allocation3], 5376
        $region32: #{tpu_custom_call.1} parent=27 // pred_fallthru
          _
        %s177 = sand.u32 %s63, 1
        %s178 = scalar_lea.sflag [#allocation6], %s177
        %s179 = sand.u32 %s63, 1
        %s180 = smul.addr %s179, 672
        %s181 = scalar_lea.vmem [#allocation5], %s180
        // Predicated region
        $region33: #{tpu_custom_call.1} parent=27 // pred_check
          %p182 = pneg %p76
        $region34: #{tpu_custom_call.1} parent=27 // pred_check_branch
          %184 = sbr.rel (%p182) target = $region36
        $region35: #{tpu_custom_call.1} parent=27 // pred_region
          %185 = dma.done %s178, 10752
        $region36: #{tpu_custom_call.1} parent=27 // pred_fallthru
          _
        %p186 = pneg %p48
        %p187 = pneg %p45
        %s188 = sand.u32 %s63, 1
        %s189 = scalar_lea.sflag [#allocation6], %s188
        %s190 = sand.u32 %s63, 1
        %s191 = smul.addr %s190, 672
        %s192 = scalar_lea.vmem [#allocation5], %s191
        %p193 = pneg %p76
        %p194 = pneg %p73
        %p195 = pneg %p104
        %p196 = pneg %p101
        %s197 = sand.u32 %s91, 1
        %s198 = scalar_lea.sflag [#allocation4], %s197
        %s199 = sand.u32 %s91, 1
        %s200 = smul.addr %s199, 672
        %s201 = scalar_lea.vmem [#allocation7], %s200
        %s202 = smul.u32 4, %s25
        %s203 = ssub.s32 7, %s202
        %p204 = scmp.lt.s32.totalorder %s203, 4
        %s205 = scalar_select %p204, %s203, 4
        %s206 = smul.u32 2688, %s205
        %s207 = smul.u32 4, %s25
        %s208 = ssub.s32 7, %s207
        %p209 = scmp.lt.s32.totalorder %s208, 4
        %s210 = scalar_select %p209, %s208, 4
        %s211 = smul.u32 2688, %s210
        %v213 = vld [vmem:[%s181] sm:$0xff]
        %v214 = vld [vmem:[%s181 + $0x8] sm:$0xff]
        %v215 = vld [vmem:[%s181 + $0x10] sm:$0xff]
        %v216 = vld [vmem:[%s181 + $0x18] sm:$0xff]
        %v217 = vld [vmem:[%s181 + $0x20] sm:$0xff]
        %v218 = vld [vmem:[%s181 + $0x28] sm:$0xff]
        %v219 = vld [vmem:[%s181 + $0x30] sm:$0xff]
        %v220 = vld [vmem:[%s181 + $0x38] sm:$0xff]
        %v221 = vld [vmem:[%s181 + $0x40] sm:$0xff]
        %v222 = vld [vmem:[%s181 + $0x48] sm:$0xff]
        %v223 = vld [vmem:[%s181 + $0x50] sm:$0xff]
        %v224 = vld [vmem:[%s181 + $0x58] sm:$0xff]
        %v225 = vld [vmem:[%s181 + $0x60] sm:$0xff]
        %v226 = vld [vmem:[%s181 + $0x68] sm:$0xff]
        %v227 = vld [vmem:[%s181 + $0x70] sm:$0xff]
        %v228 = vld [vmem:[%s181 + $0x78] sm:$0xff]
        %v229 = vld [vmem:[%s181 + $0x80] sm:$0xff]
        %v230 = vld [vmem:[%s181 + $0x88] sm:$0xff]
        %v231 = vld [vmem:[%s181 + $0x90] sm:$0xff]
        %v232 = vld [vmem:[%s181 + $0x98] sm:$0xff]
        %v233 = vld [vmem:[%s181 + $0xa0] sm:$0xff]
        %v234 = vld [vmem:[%s181 + $0xa8] sm:$0xff]
        %v235 = vld [vmem:[%s181 + $0xb0] sm:$0xff]
        %v236 = vld [vmem:[%s181 + $0xb8] sm:$0xff]
        %v237 = vld [vmem:[%s181 + $0xc0] sm:$0xff]
        %v238 = vld [vmem:[%s181 + $0xc8] sm:$0xff]
        %v239 = vld [vmem:[%s181 + $0xd0] sm:$0xff]
        %v240 = vld [vmem:[%s181 + $0xd8] sm:$0xff]
        %v241 = vld [vmem:[%s181 + $0xe0] sm:$0xff]
        %v242 = vld [vmem:[%s181 + $0xe8] sm:$0xff]
        %v243 = vld [vmem:[%s181 + $0xf0] sm:$0xff]
        %v244 = vld [vmem:[%s181 + $0xf8] sm:$0xff]
        %v245 = vld [vmem:[%s181 + $0x100] sm:$0xff]
        %v246 = vld [vmem:[%s181 + $0x108] sm:$0xff]
        %v247 = vld [vmem:[%s181 + $0x110] sm:$0xff]
        %v248 = vld [vmem:[%s181 + $0x118] sm:$0xff]
        %v249 = vld [vmem:[%s181 + $0x120] sm:$0xff]
        %v250 = vld [vmem:[%s181 + $0x128] sm:$0xff]
        %v251 = vld [vmem:[%s181 + $0x130] sm:$0xff]
        %v252 = vld [vmem:[%s181 + $0x138] sm:$0xff]
        %v253 = vld [vmem:[%s181 + $0x140] sm:$0xff]
        %v254 = vld [vmem:[%s181 + $0x148] sm:$0xff]
        %v255 = vld [vmem:[%s181 + $0x150] sm:$0xff]
        %v256 = vld [vmem:[%s181 + $0x158] sm:$0xff]
        %v257 = vld [vmem:[%s181 + $0x160] sm:$0xff]
        %v258 = vld [vmem:[%s181 + $0x168] sm:$0xff]
        %v259 = vld [vmem:[%s181 + $0x170] sm:$0xff]
        %v260 = vld [vmem:[%s181 + $0x178] sm:$0xff]
        %v261 = vld [vmem:[%s181 + $0x180] sm:$0xff]
        %v262 = vld [vmem:[%s181 + $0x188] sm:$0xff]
        %v263 = vld [vmem:[%s181 + $0x190] sm:$0xff]
        %v264 = vld [vmem:[%s181 + $0x198] sm:$0xff]
        %v265 = vld [vmem:[%s181 + $0x1a0] sm:$0xff]
        %v266 = vld [vmem:[%s181 + $0x1a8] sm:$0xff]
        %v267 = vld [vmem:[%s181 + $0x1b0] sm:$0xff]
        %v268 = vld [vmem:[%s181 + $0x1b8] sm:$0xff]
        %v269 = vld [vmem:[%s181 + $0x1c0] sm:$0xff]
        %v270 = vld [vmem:[%s181 + $0x1c8] sm:$0xff]
        %v271 = vld [vmem:[%s181 + $0x1d0] sm:$0xff]
        %v272 = vld [vmem:[%s181 + $0x1d8] sm:$0xff]
        %v273 = vld [vmem:[%s181 + $0x1e0] sm:$0xff]
        %v274 = vld [vmem:[%s181 + $0x1e8] sm:$0xff]
        %v275 = vld [vmem:[%s181 + $0x1f0] sm:$0xff]
        %v276 = vld [vmem:[%s181 + $0x1f8] sm:$0xff]
        %v277 = vld [vmem:[%s181 + $0x200] sm:$0xff]
        %v278 = vld [vmem:[%s181 + $0x208] sm:$0xff]
        %v279 = vld [vmem:[%s181 + $0x210] sm:$0xff]
        %v280 = vld [vmem:[%s181 + $0x218] sm:$0xff]
        %v281 = vld [vmem:[%s181 + $0x220] sm:$0xff]
        %v282 = vld [vmem:[%s181 + $0x228] sm:$0xff]
        %v283 = vld [vmem:[%s181 + $0x230] sm:$0xff]
        %v284 = vld [vmem:[%s181 + $0x238] sm:$0xff]
        %v285 = vld [vmem:[%s181 + $0x240] sm:$0xff]
        %v286 = vld [vmem:[%s181 + $0x248] sm:$0xff]
        %v287 = vld [vmem:[%s181 + $0x250] sm:$0xff]
        %v288 = vld [vmem:[%s181 + $0x258] sm:$0xff]
        %v289 = vld [vmem:[%s181 + $0x260] sm:$0xff]
        %v290 = vld [vmem:[%s181 + $0x268] sm:$0xff]
        %v291 = vld [vmem:[%s181 + $0x270] sm:$0xff]
        %v292 = vld [vmem:[%s181 + $0x278] sm:$0xff]
        %v293 = vld [vmem:[%s181 + $0x280] sm:$0xff]
        %v294 = vld [vmem:[%s181 + $0x288] sm:$0xff]
        %v295 = vld [vmem:[%s181 + $0x290] sm:$0xff]
        %v296 = vld [vmem:[%s181 + $0x298] sm:$0xff]
        %v297 = vmax.f32 %v213, 0.0
        %v298 = vmax.f32 %v214, 0.0
        %v299 = vmax.f32 %v215, 0.0
        %v300 = vmax.f32 %v216, 0.0
        %v301 = vmax.f32 %v217, 0.0
        %v302 = vmax.f32 %v218, 0.0
        %v303 = vmax.f32 %v219, 0.0
        %v304 = vmax.f32 %v220, 0.0
        %v305 = vmax.f32 %v221, 0.0
        %v306 = vmax.f32 %v222, 0.0
        %v307 = vmax.f32 %v223, 0.0
        %v308 = vmax.f32 %v224, 0.0
        %v309 = vmax.f32 %v225, 0.0
        %v310 = vmax.f32 %v226, 0.0
        %v311 = vmax.f32 %v227, 0.0
        %v312 = vmax.f32 %v228, 0.0
        %v313 = vmax.f32 %v229, 0.0
        %v314 = vmax.f32 %v230, 0.0
        %v315 = vmax.f32 %v231, 0.0
        %v316 = vmax.f32 %v232, 0.0
        %v317 = vmax.f32 %v233, 0.0
        %v318 = vmax.f32 %v234, 0.0
        %v319 = vmax.f32 %v235, 0.0
        %v320 = vmax.f32 %v236, 0.0
        %v321 = vmax.f32 %v237, 0.0
        %v322 = vmax.f32 %v238, 0.0
        %v323 = vmax.f32 %v239, 0.0
        %v324 = vmax.f32 %v240, 0.0
        %v325 = vmax.f32 %v241, 0.0
        %v326 = vmax.f32 %v242, 0.0
        %v327 = vmax.f32 %v243, 0.0
        %v328 = vmax.f32 %v244, 0.0
        %v329 = vmax.f32 %v245, 0.0
        %v330 = vmax.f32 %v246, 0.0
        %v331 = vmax.f32 %v247, 0.0
        %v332 = vmax.f32 %v248, 0.0
        %v333 = vmax.f32 %v249, 0.0
        %v334 = vmax.f32 %v250, 0.0
        %v335 = vmax.f32 %v251, 0.0
        %v336 = vmax.f32 %v252, 0.0
        %v337 = vmax.f32 %v253, 0.0
        %v338 = vmax.f32 %v254, 0.0
        %v339 = vmax.f32 %v255, 0.0
        %v340 = vmax.f32 %v256, 0.0
        %v341 = vmax.f32 %v257, 0.0
        %v342 = vmax.f32 %v258, 0.0
        %v343 = vmax.f32 %v259, 0.0
        %v344 = vmax.f32 %v260, 0.0
        %v345 = vmax.f32 %v261, 0.0
        %v346 = vmax.f32 %v262, 0.0
        %v347 = vmax.f32 %v263, 0.0
        %v348 = vmax.f32 %v264, 0.0
        %v349 = vmax.f32 %v265, 0.0
        %v350 = vmax.f32 %v266, 0.0
        %v351 = vmax.f32 %v267, 0.0
        %v352 = vmax.f32 %v268, 0.0
        %v353 = vmax.f32 %v269, 0.0
        %v354 = vmax.f32 %v270, 0.0
        %v355 = vmax.f32 %v271, 0.0
        %v356 = vmax.f32 %v272, 0.0
        %v357 = vmax.f32 %v273, 0.0
        %v358 = vmax.f32 %v274, 0.0
        %v359 = vmax.f32 %v275, 0.0
        %v360 = vmax.f32 %v276, 0.0
        %v361 = vmax.f32 %v277, 0.0
        %v362 = vmax.f32 %v278, 0.0
        %v363 = vmax.f32 %v279, 0.0
        %v364 = vmax.f32 %v280, 0.0
        %v365 = vmax.f32 %v281, 0.0
        %v366 = vmax.f32 %v282, 0.0
        %v367 = vmax.f32 %v283, 0.0
        %v368 = vmax.f32 %v284, 0.0
        %v369 = vmax.f32 %v285, 0.0
        %v370 = vmax.f32 %v286, 0.0
        %v371 = vmax.f32 %v287, 0.0
        %v372 = vmax.f32 %v288, 0.0
        %v373 = vmax.f32 %v289, 0.0
        %v374 = vmax.f32 %v290, 0.0
        %v375 = vmax.f32 %v291, 0.0
        %v376 = vmax.f32 %v292, 0.0
        %v377 = vmax.f32 %v293, 0.0
        %v378 = vmax.f32 %v294, 0.0
        %v379 = vmax.f32 %v295, 0.0
        %v380 = vmax.f32 %v296, 0.0
        %v381 = vpack.c.bf16 %v301, %v297
        %v382 = vpack.c.bf16 %v302, %v298
        %v383 = vpack.c.bf16 %v303, %v299
        %v384 = vpack.c.bf16 %v304, %v300
        %v385 = vpack.c.bf16 %v309, %v305
        %v386 = vpack.c.bf16 %v310, %v306
        %v387 = vpack.c.bf16 %v311, %v307
        %v388 = vpack.c.bf16 %v312, %v308
        %v389 = vpack.c.bf16 %v317, %v313
        %v390 = vpack.c.bf16 %v318, %v314
        %v391 = vpack.c.bf16 %v319, %v315
        %v392 = vpack.c.bf16 %v320, %v316
        %v393 = vpack.c.bf16 %v325, %v321
        %v394 = vpack.c.bf16 %v326, %v322
        %v395 = vpack.c.bf16 %v327, %v323
        %v396 = vpack.c.bf16 %v328, %v324
        %v397 = vpack.c.bf16 %v333, %v329
        %v398 = vpack.c.bf16 %v334, %v330
        %v399 = vpack.c.bf16 %v335, %v331
        %v400 = vpack.c.bf16 %v336, %v332
        %v401 = vpack.c.bf16 %v341, %v337
        %v402 = vpack.c.bf16 %v342, %v338
        %v403 = vpack.c.bf16 %v343, %v339
        %v404 = vpack.c.bf16 %v344, %v340
        %v405 = vpack.c.bf16 %v349, %v345
        %v406 = vpack.c.bf16 %v350, %v346
        %v407 = vpack.c.bf16 %v351, %v347
        %v408 = vpack.c.bf16 %v352, %v348
        %v409 = vpack.c.bf16 %v357, %v353
        %v410 = vpack.c.bf16 %v358, %v354
        %v411 = vpack.c.bf16 %v359, %v355
        %v412 = vpack.c.bf16 %v360, %v356
        %v413 = vpack.c.bf16 %v365, %v361
        %v414 = vpack.c.bf16 %v366, %v362
        %v415 = vpack.c.bf16 %v367, %v363
        %v416 = vpack.c.bf16 %v368, %v364
        %v417 = vpack.c.bf16 %v373, %v369
        %v418 = vpack.c.bf16 %v374, %v370
        %v419 = vpack.c.bf16 %v375, %v371
        %v420 = vpack.c.bf16 %v376, %v372
        %v421 = vpack.c.bf16 %v377, %v377
        %v422 = vpack.c.bf16 %v378, %v378
        %v423 = vpack.c.bf16 %v379, %v379
        %v424 = vpack.c.bf16 %v380, %v380
        %v425 = vld [vmem:[#allocation2] sm:$0xff]
        %v426 = vld [vmem:[#allocation2 + $0x8] sm:$0xff]
        %v427 = vld [vmem:[#allocation2 + $0x10] sm:$0xff]
        %v428 = vld [vmem:[#allocation2 + $0x18] sm:$0xff]
        %v429 = vld [vmem:[#allocation2 + $0x20] sm:$0xff]
        %v430 = vld [vmem:[#allocation2 + $0x28] sm:$0xff]
        %v431 = vld [vmem:[#allocation2 + $0x30] sm:$0xff]
        %v432 = vld [vmem:[#allocation2 + $0x38] sm:$0xff]
        %v433 = vld [vmem:[#allocation2 + $0x40] sm:$0xff]
        %v434 = vld [vmem:[#allocation2 + $0x48] sm:$0xff]
        %v435 = vld [vmem:[#allocation2 + $0x50] sm:$0xff]
        %v436 = vld [vmem:[#allocation2 + $0x58] sm:$0xff]
        %v437 = vld [vmem:[#allocation2 + $0x60] sm:$0xff]
        %v438 = vld [vmem:[#allocation2 + $0x68] sm:$0xff]
        %v439 = vld [vmem:[#allocation2 + $0x70] sm:$0xff]
        %v440 = vld [vmem:[#allocation2 + $0x78] sm:$0xff]
        %v441 = vld [vmem:[#allocation2 + $0x80] sm:$0xff]
        %v442 = vld [vmem:[#allocation2 + $0x88] sm:$0xff]
        %v443 = vld [vmem:[#allocation2 + $0x90] sm:$0xff]
        %v444 = vld [vmem:[#allocation2 + $0x98] sm:$0xff]
        %v445 = vld [vmem:[#allocation2 + $0xa0] sm:$0xff]
        %v446 = vld [vmem:[#allocation2 + $0xa8] sm:$0xff]
        %v447 = vld [vmem:[#allocation2 + $0xb0] sm:$0xff]
        %v448 = vld [vmem:[#allocation2 + $0xb8] sm:$0xff]
        %v449 = vld [vmem:[#allocation2 + $0xc0] sm:$0xff]
        %v450 = vld [vmem:[#allocation2 + $0xc8] sm:$0xff]
        %v451 = vld [vmem:[#allocation2 + $0xd0] sm:$0xff]
        %v452 = vld [vmem:[#allocation2 + $0xd8] sm:$0xff]
        %v453 = vld [vmem:[#allocation2 + $0xe0] sm:$0xff]
        %v454 = vld [vmem:[#allocation2 + $0xe8] sm:$0xff]
        %v455 = vld [vmem:[#allocation2 + $0xf0] sm:$0xff]
        %v456 = vld [vmem:[#allocation2 + $0xf8] sm:$0xff]
        %v457 = vld [vmem:[#allocation2 + $0x100] sm:$0xff]
        %v458 = vld [vmem:[#allocation2 + $0x108] sm:$0xff]
        %v459 = vld [vmem:[#allocation2 + $0x110] sm:$0xff]
        %v460 = vld [vmem:[#allocation2 + $0x118] sm:$0xff]
        %v461 = vld [vmem:[#allocation2 + $0x120] sm:$0xff]
        %v462 = vld [vmem:[#allocation2 + $0x128] sm:$0xff]
        %v463 = vld [vmem:[#allocation2 + $0x130] sm:$0xff]
        %v464 = vld [vmem:[#allocation2 + $0x138] sm:$0xff]
        %v465 = vld [vmem:[#allocation2 + $0x140] sm:$0xff]
        %v466 = vld [vmem:[#allocation2 + $0x148] sm:$0xff]
        %v467 = vpack.c.bf16 %v427, %v425
        %v468 = vpack.c.bf16 %v428, %v426
        %v469 = vpack.c.bf16 %v431, %v429
        %v470 = vpack.c.bf16 %v432, %v430
        %v471 = vpack.c.bf16 %v435, %v433
        %v472 = vpack.c.bf16 %v436, %v434
        %v473 = vpack.c.bf16 %v439, %v437
        %v474 = vpack.c.bf16 %v440, %v438
        %v475 = vpack.c.bf16 %v443, %v441
        %v476 = vpack.c.bf16 %v444, %v442
        %v477 = vpack.c.bf16 %v447, %v445
        %v478 = vpack.c.bf16 %v448, %v446
        %v479 = vpack.c.bf16 %v451, %v449
        %v480 = vpack.c.bf16 %v452, %v450
        %v481 = vpack.c.bf16 %v455, %v453
        %v482 = vpack.c.bf16 %v456, %v454
        %v483 = vpack.c.bf16 %v459, %v457
        %v484 = vpack.c.bf16 %v460, %v458
        %v485 = vpack.c.bf16 %v463, %v461
        %v486 = vpack.c.bf16 %v464, %v462
        %v487 = vpack.c.bf16 %v465, %v465
        %v488 = vpack.c.bf16 %v466, %v466
        %vm489 = vcmask 326656
        %v491 = vsel %vm489, %v468, 0
        %v494 = vsel %vm489, %v470, 0
        %v497 = vsel %vm489, %v472, 0
        %v500 = vsel %vm489, %v474, 0
        %v503 = vsel %vm489, %v476, 0
        %v506 = vsel %vm489, %v478, 0
        %v509 = vsel %vm489, %v480, 0
        %v512 = vsel %vm489, %v482, 0
        %v515 = vsel %vm489, %v484, 0
        %v518 = vsel %vm489, %v486, 0
        %v521 = vsel %vm489, %v488, 0
        %vm523 = vcmask 1043456
        %v525 = vsel %vm523, %v421, 0
        %v528 = vsel %vm523, %v422, 0
        %v531 = vsel %vm523, %v423, 0
        %v534 = vsel %vm523, %v424, 0
        %536 = vmatprep.subr.bf16.mxu0 %v410
        %537 = vmatpush1.bf16.msra.mxu0 %v409
        %538 = vmatprep.subr.bf16.mxu0 %v406
        %539 = vmatpush1.bf16.msra.mxu0 %v405
        %540 = vmatprep.subr.bf16.mxu0 %v402
        %541 = vmatpush1.bf16.msra.mxu0 %v401
        %542 = vmatprep.subr.bf16.mxu0 %v398
        %543 = vmatpush1.bf16.msra.mxu0 %v397
        %544 = vmatprep.subr.bf16.mxu0 %v394
        %545 = vmatpush1.bf16.msra.mxu0 %v393
        %546 = vmatprep.subr.bf16.mxu0 %v390
        %547 = vmatpush1.bf16.msra.mxu0 %v389
        %548 = vmatprep.subr.bf16.mxu0 %v386
        %549 = vmatpush1.bf16.msra.mxu0 %v385
        %550 = vmatprep.subr.bf16.mxu0 %v382
        %551 = vmatpush1.bf16.msra.mxu0 %v381
        %552 = vmatprep.subr.bf16.mxu0 0
        %553 = vmatpush2.bf16.msra.mxu0 0
        %554 = vmatprep.subr.bf16.mxu0 0
        %555 = vmatpush2.bf16.msra.mxu0 0
        %556 = vmatprep.subr.bf16.mxu0 0
        %557 = vmatpush2.bf16.msra.mxu0 0
        %558 = vmatprep.subr.bf16.mxu0 0
        %559 = vmatpush2.bf16.msra.mxu0 0
        %560 = vmatprep.subr.bf16.mxu0 0
        %561 = vmatpush2.bf16.msra.mxu0 0
        %562 = vmatprep.subr.bf16.mxu0 %v528
        %563 = vmatpush2.bf16.msra.mxu0 %v525
        %564 = vmatprep.subr.bf16.mxu0 %v418
        %565 = vmatpush2.bf16.msra.mxu0 %v417
        %566 = vmatprep.subr.bf16.mxu0 %v414
        %567 = vmatpush2.bf16.msra.mxu0 %v413
        %568 = vmatprep.mubr.bf16.mxu0 %v491
        %569 = vmatmul.mubr.bf16.gmra.mxu0 %v467
        %v570 = vpop.f32.mrf.mxu0
        %v571 = vadd.f32 0.0, %v570
        %v572 = vpop.f32.mrf.mxu0
        %v573 = vadd.f32 0.0, %v572
        %v574 = vpop.f32.mrf.mxu0
        %v575 = vadd.f32 0.0, %v574
        %v576 = vpop.f32.mrf.mxu0
        %v577 = vadd.f32 0.0, %v576
        %578 = vmatprep.mubr.bf16.mxu0 %v494
        %579 = vmatmul.mubr.bf16.gmra.mxu0 %v469
        %v580 = vpop.f32.mrf.mxu0
        %v581 = vadd.f32 0.0, %v580
        %v582 = vpop.f32.mrf.mxu0
        %v583 = vadd.f32 0.0, %v582
        %v584 = vpop.f32.mrf.mxu0
        %v585 = vadd.f32 0.0, %v584
        %v586 = vpop.f32.mrf.mxu0
        %v587 = vadd.f32 0.0, %v586
        %588 = vmatprep.mubr.bf16.mxu0 %v497
        %589 = vmatmul.mubr.bf16.gmra.mxu0 %v471
        %v590 = vpop.f32.mrf.mxu0
        %v591 = vadd.f32 0.0, %v590
        %v592 = vpop.f32.mrf.mxu0
        %v593 = vadd.f32 0.0, %v592
        %v594 = vpop.f32.mrf.mxu0
        %v595 = vadd.f32 0.0, %v594
        %v596 = vpop.f32.mrf.mxu0
        %v597 = vadd.f32 0.0, %v596
        %598 = vmatprep.mubr.bf16.mxu0 %v500
        %599 = vmatmul.mubr.bf16.gmra.mxu0 %v473
        %v600 = vpop.f32.mrf.mxu0
        %v601 = vadd.f32 0.0, %v600
        %v602 = vpop.f32.mrf.mxu0
        %v603 = vadd.f32 0.0, %v602
        %v604 = vpop.f32.mrf.mxu0
        %v605 = vadd.f32 0.0, %v604
        %v606 = vpop.f32.mrf.mxu0
        %v607 = vadd.f32 0.0, %v606
        %608 = vmatprep.mubr.bf16.mxu0 %v503
        %609 = vmatmul.mubr.bf16.gmra.mxu0 %v475
        %v610 = vpop.f32.mrf.mxu0
        %v611 = vadd.f32 0.0, %v610
        %v612 = vpop.f32.mrf.mxu0
        %v613 = vadd.f32 0.0, %v612
        %v614 = vpop.f32.mrf.mxu0
        %v615 = vadd.f32 0.0, %v614
        %v616 = vpop.f32.mrf.mxu0
        %v617 = vadd.f32 0.0, %v616
        %618 = vmatprep.mubr.bf16.mxu0 %v506
        %619 = vmatmul.mubr.bf16.gmra.mxu0 %v477
        %v620 = vpop.f32.mrf.mxu0
        %v621 = vadd.f32 0.0, %v620
        %v622 = vpop.f32.mrf.mxu0
        %v623 = vadd.f32 0.0, %v622
        %v624 = vpop.f32.mrf.mxu0
        %v625 = vadd.f32 0.0, %v624
        %v626 = vpop.f32.mrf.mxu0
        %v627 = vadd.f32 0.0, %v626
        %628 = vmatprep.mubr.bf16.mxu0 %v509
        %629 = vmatmul.mubr.bf16.gmra.mxu0 %v479
        %v630 = vpop.f32.mrf.mxu0
        %v631 = vadd.f32 0.0, %v630
        %v632 = vpop.f32.mrf.mxu0
        %v633 = vadd.f32 0.0, %v632
        %v634 = vpop.f32.mrf.mxu0
        %v635 = vadd.f32 0.0, %v634
        %v636 = vpop.f32.mrf.mxu0
        %v637 = vadd.f32 0.0, %v636
        %638 = vmatprep.mubr.bf16.mxu0 %v512
        %639 = vmatmul.mubr.bf16.gmra.mxu0 %v481
        %v640 = vpop.f32.mrf.mxu0
        %v641 = vadd.f32 0.0, %v640
        %v642 = vpop.f32.mrf.mxu0
        %v643 = vadd.f32 0.0, %v642
        %v644 = vpop.f32.mrf.mxu0
        %v645 = vadd.f32 0.0, %v644
        %v646 = vpop.f32.mrf.mxu0
        %v647 = vadd.f32 0.0, %v646
        %648 = vmatprep.mubr.bf16.mxu0 %v515
        %649 = vmatmul.mubr.bf16.gmra.mxu0 %v483
        %v650 = vpop.f32.mrf.mxu0
        %v651 = vadd.f32 0.0, %v650
        %v652 = vpop.f32.mrf.mxu0
        %v653 = vadd.f32 0.0, %v652
        %v654 = vpop.f32.mrf.mxu0
        %v655 = vadd.f32 0.0, %v654
        %v656 = vpop.f32.mrf.mxu0
        %v657 = vadd.f32 0.0, %v656
        %658 = vmatprep.mubr.bf16.mxu0 %v518
        %659 = vmatmul.mubr.bf16.gmra.mxu0 %v485
        %v660 = vpop.f32.mrf.mxu0
        %v661 = vadd.f32 0.0, %v660
        %v662 = vpop.f32.mrf.mxu0
        %v663 = vadd.f32 0.0, %v662
        %v664 = vpop.f32.mrf.mxu0
        %v665 = vadd.f32 0.0, %v664
        %v666 = vpop.f32.mrf.mxu0
        %v667 = vadd.f32 0.0, %v666
        %668 = vmatprep.mubr.bf16.mxu0 %v521
        %669 = vmatmul.mubr.bf16.gmra.mxu0 %v487
        %v670 = vpop.f32.mrf.mxu0
        %v671 = vadd.f32 0.0, %v670
        %v672 = vpop.f32.mrf.mxu0
        %v673 = vadd.f32 0.0, %v672
        %v674 = vpop.f32.mrf.mxu0
        %v675 = vpop.f32.mrf.mxu0
        %676 = vdwg.mxu0
        %677 = vmatprep.subr.bf16.mxu0 %v412
        %678 = vmatpush1.bf16.msra.mxu0 %v411
        %679 = vmatprep.subr.bf16.mxu0 %v408
        %680 = vmatpush1.bf16.msra.mxu0 %v407
        %681 = vmatprep.subr.bf16.mxu0 %v404
        %682 = vmatpush1.bf16.msra.mxu0 %v403
        %683 = vmatprep.subr.bf16.mxu0 %v400
        %684 = vmatpush1.bf16.msra.mxu0 %v399
        %685 = vmatprep.subr.bf16.mxu0 %v396
        %686 = vmatpush1.bf16.msra.mxu0 %v395
        %687 = vmatprep.subr.bf16.mxu0 %v392
        %688 = vmatpush1.bf16.msra.mxu0 %v391
        %689 = vmatprep.subr.bf16.mxu0 %v388
        %690 = vmatpush1.bf16.msra.mxu0 %v387
        %691 = vmatprep.subr.bf16.mxu0 %v384
        %692 = vmatpush1.bf16.msra.mxu0 %v383
        %693 = vmatprep.subr.bf16.mxu0 0
        %694 = vmatpush2.bf16.msra.mxu0 0
        %695 = vmatprep.subr.bf16.mxu0 0
        %696 = vmatpush2.bf16.msra.mxu0 0
        %697 = vmatprep.subr.bf16.mxu0 0
        %698 = vmatpush2.bf16.msra.mxu0 0
        %699 = vmatprep.subr.bf16.mxu0 0
        %700 = vmatpush2.bf16.msra.mxu0 0
        %701 = vmatprep.subr.bf16.mxu0 0
        %702 = vmatpush2.bf16.msra.mxu0 0
        %703 = vmatprep.subr.bf16.mxu0 %v534
        %704 = vmatpush2.bf16.msra.mxu0 %v531
        %705 = vmatprep.subr.bf16.mxu0 %v420
        %706 = vmatpush2.bf16.msra.mxu0 %v419
        %707 = vmatprep.subr.bf16.mxu0 %v416
        %708 = vmatpush2.bf16.msra.mxu0 %v415
        %709 = vmatprep.mubr.bf16.mxu0 %v491
        %710 = vmatmul.mubr.bf16.gmra.mxu0 %v467
        %v711 = vpop.f32.mrf.mxu0
        %v712 = vadd.f32 0.0, %v711
        %v713 = vpop.f32.mrf.mxu0
        %v714 = vadd.f32 0.0, %v713
        %v715 = vpop.f32.mrf.mxu0
        %v716 = vadd.f32 0.0, %v715
        %v717 = vpop.f32.mrf.mxu0
        %v718 = vadd.f32 0.0, %v717
        %719 = vmatprep.mubr.bf16.mxu0 %v494
        %720 = vmatmul.mubr.bf16.gmra.mxu0 %v469
        %v721 = vpop.f32.mrf.mxu0
        %v722 = vadd.f32 0.0, %v721
        %v723 = vpop.f32.mrf.mxu0
        %v724 = vadd.f32 0.0, %v723
        %v725 = vpop.f32.mrf.mxu0
        %v726 = vadd.f32 0.0, %v725
        %v727 = vpop.f32.mrf.mxu0
        %v728 = vadd.f32 0.0, %v727
        %729 = vmatprep.mubr.bf16.mxu0 %v497
        %730 = vmatmul.mubr.bf16.gmra.mxu0 %v471
        %v731 = vpop.f32.mrf.mxu0
        %v732 = vadd.f32 0.0, %v731
        %v733 = vpop.f32.mrf.mxu0
        %v734 = vadd.f32 0.0, %v733
        %v735 = vpop.f32.mrf.mxu0
        %v736 = vadd.f32 0.0, %v735
        %v737 = vpop.f32.mrf.mxu0
        %v738 = vadd.f32 0.0, %v737
        %739 = vmatprep.mubr.bf16.mxu0 %v500
        %740 = vmatmul.mubr.bf16.gmra.mxu0 %v473
        %v741 = vpop.f32.mrf.mxu0
        %v742 = vadd.f32 0.0, %v741
        %v743 = vpop.f32.mrf.mxu0
        %v744 = vadd.f32 0.0, %v743
        %v745 = vpop.f32.mrf.mxu0
        %v746 = vadd.f32 0.0, %v745
        %v747 = vpop.f32.mrf.mxu0
        %v748 = vadd.f32 0.0, %v747
        %749 = vmatprep.mubr.bf16.mxu0 %v503
        %750 = vmatmul.mubr.bf16.gmra.mxu0 %v475
        %v751 = vpop.f32.mrf.mxu0
        %v752 = vadd.f32 0.0, %v751
        %v753 = vpop.f32.mrf.mxu0
        %v754 = vadd.f32 0.0, %v753
        %v755 = vpop.f32.mrf.mxu0
        %v756 = vadd.f32 0.0, %v755
        %v757 = vpop.f32.mrf.mxu0
        %v758 = vadd.f32 0.0, %v757
        %759 = vmatprep.mubr.bf16.mxu0 %v506
        %760 = vmatmul.mubr.bf16.gmra.mxu0 %v477
        %v761 = vpop.f32.mrf.mxu0
        %v762 = vadd.f32 0.0, %v761
        %v763 = vpop.f32.mrf.mxu0
        %v764 = vadd.f32 0.0, %v763
        %v765 = vpop.f32.mrf.mxu0
        %v766 = vadd.f32 0.0, %v765
        %v767 = vpop.f32.mrf.mxu0
        %v768 = vadd.f32 0.0, %v767
        %769 = vmatprep.mubr.bf16.mxu0 %v509
        %770 = vmatmul.mubr.bf16.gmra.mxu0 %v479
        %v771 = vpop.f32.mrf.mxu0
        %v772 = vadd.f32 0.0, %v771
        %v773 = vpop.f32.mrf.mxu0
        %v774 = vadd.f32 0.0, %v773
        %v775 = vpop.f32.mrf.mxu0
        %v776 = vadd.f32 0.0, %v775
        %v777 = vpop.f32.mrf.mxu0
        %v778 = vadd.f32 0.0, %v777
        %779 = vmatprep.mubr.bf16.mxu0 %v512
        %780 = vmatmul.mubr.bf16.gmra.mxu0 %v481
        %v781 = vpop.f32.mrf.mxu0
        %v782 = vadd.f32 0.0, %v781
        %v783 = vpop.f32.mrf.mxu0
        %v784 = vadd.f32 0.0, %v783
        %v785 = vpop.f32.mrf.mxu0
        %v786 = vadd.f32 0.0, %v785
        %v787 = vpop.f32.mrf.mxu0
        %v788 = vadd.f32 0.0, %v787
        %789 = vmatprep.mubr.bf16.mxu0 %v515
        %790 = vmatmul.mubr.bf16.gmra.mxu0 %v483
        %v791 = vpop.f32.mrf.mxu0
        %v792 = vadd.f32 0.0, %v791
        %v793 = vpop.f32.mrf.mxu0
        %v794 = vadd.f32 0.0, %v793
        %v795 = vpop.f32.mrf.mxu0
        %v796 = vadd.f32 0.0, %v795
        %v797 = vpop.f32.mrf.mxu0
        %v798 = vadd.f32 0.0, %v797
        %799 = vmatprep.mubr.bf16.mxu0 %v518
        %800 = vmatmul.mubr.bf16.gmra.mxu0 %v485
        %v801 = vpop.f32.mrf.mxu0
        %v802 = vadd.f32 0.0, %v801
        %v803 = vpop.f32.mrf.mxu0
        %v804 = vadd.f32 0.0, %v803
        %v805 = vpop.f32.mrf.mxu0
        %v806 = vadd.f32 0.0, %v805
        %v807 = vpop.f32.mrf.mxu0
        %v808 = vadd.f32 0.0, %v807
        %809 = vmatprep.mubr.bf16.mxu0 %v521
        %810 = vmatmul.mubr.bf16.gmra.mxu0 %v487
        %v811 = vpop.f32.mrf.mxu0
        %v812 = vadd.f32 0.0, %v811
        %v813 = vpop.f32.mrf.mxu0
        %v814 = vadd.f32 0.0, %v813
        %v815 = vpop.f32.mrf.mxu0
        %v816 = vpop.f32.mrf.mxu0
        %817 = vdwg.mxu0
        %818 = vst [vmem:[%s201] sm:$0xff] %v571
        %819 = vst [vmem:[%s201 + $0x8] sm:$0xff] %v573
        %820 = vst [vmem:[%s201 + $0x10] sm:$0xff] %v712
        %821 = vst [vmem:[%s201 + $0x18] sm:$0xff] %v714
        %822 = vst [vmem:[%s201 + $0x20] sm:$0xff] %v575
        %823 = vst [vmem:[%s201 + $0x28] sm:$0xff] %v577
        %824 = vst [vmem:[%s201 + $0x30] sm:$0xff] %v716
        %825 = vst [vmem:[%s201 + $0x38] sm:$0xff] %v718
        %826 = vst [vmem:[%s201 + $0x40] sm:$0xff] %v581
        %827 = vst [vmem:[%s201 + $0x48] sm:$0xff] %v583
        %828 = vst [vmem:[%s201 + $0x50] sm:$0xff] %v722
        %829 = vst [vmem:[%s201 + $0x58] sm:$0xff] %v724
        %830 = vst [vmem:[%s201 + $0x60] sm:$0xff] %v585
        %831 = vst [vmem:[%s201 + $0x68] sm:$0xff] %v587
        %832 = vst [vmem:[%s201 + $0x70] sm:$0xff] %v726
        %833 = vst [vmem:[%s201 + $0x78] sm:$0xff] %v728
        %834 = vst [vmem:[%s201 + $0x80] sm:$0xff] %v591
        %835 = vst [vmem:[%s201 + $0x88] sm:$0xff] %v593
        %836 = vst [vmem:[%s201 + $0x90] sm:$0xff] %v732
        %837 = vst [vmem:[%s201 + $0x98] sm:$0xff] %v734
        %838 = vst [vmem:[%s201 + $0xa0] sm:$0xff] %v595
        %839 = vst [vmem:[%s201 + $0xa8] sm:$0xff] %v597
        %840 = vst [vmem:[%s201 + $0xb0] sm:$0xff] %v736
        %841 = vst [vmem:[%s201 + $0xb8] sm:$0xff] %v738
        %842 = vst [vmem:[%s201 + $0xc0] sm:$0xff] %v601
        %843 = vst [vmem:[%s201 + $0xc8] sm:$0xff] %v603
        %844 = vst [vmem:[%s201 + $0xd0] sm:$0xff] %v742
        %845 = vst [vmem:[%s201 + $0xd8] sm:$0xff] %v744
        %846 = vst [vmem:[%s201 + $0xe0] sm:$0xff] %v605
        %847 = vst [vmem:[%s201 + $0xe8] sm:$0xff] %v607
        %848 = vst [vmem:[%s201 + $0xf0] sm:$0xff] %v746
        %849 = vst [vmem:[%s201 + $0xf8] sm:$0xff] %v748
        %850 = vst [vmem:[%s201 + $0x100] sm:$0xff] %v611
        %851 = vst [vmem:[%s201 + $0x108] sm:$0xff] %v613
        %852 = vst [vmem:[%s201 + $0x110] sm:$0xff] %v752
        %853 = vst [vmem:[%s201 + $0x118] sm:$0xff] %v754
        %854 = vst [vmem:[%s201 + $0x120] sm:$0xff] %v615
        %855 = vst [vmem:[%s201 + $0x128] sm:$0xff] %v617
        %856 = vst [vmem:[%s201 + $0x130] sm:$0xff] %v756
        %857 = vst [vmem:[%s201 + $0x138] sm:$0xff] %v758
        %858 = vst [vmem:[%s201 + $0x140] sm:$0xff] %v621
        %859 = vst [vmem:[%s201 + $0x148] sm:$0xff] %v623
        %860 = vst [vmem:[%s201 + $0x150] sm:$0xff] %v762
        %861 = vst [vmem:[%s201 + $0x158] sm:$0xff] %v764
        %862 = vst [vmem:[%s201 + $0x160] sm:$0xff] %v625
        %863 = vst [vmem:[%s201 + $0x168] sm:$0xff] %v627
        %864 = vst [vmem:[%s201 + $0x170] sm:$0xff] %v766
        %865 = vst [vmem:[%s201 + $0x178] sm:$0xff] %v768
        %866 = vst [vmem:[%s201 + $0x180] sm:$0xff] %v631
        %867 = vst [vmem:[%s201 + $0x188] sm:$0xff] %v633
        %868 = vst [vmem:[%s201 + $0x190] sm:$0xff] %v772
        %869 = vst [vmem:[%s201 + $0x198] sm:$0xff] %v774
        %870 = vst [vmem:[%s201 + $0x1a0] sm:$0xff] %v635
        %871 = vst [vmem:[%s201 + $0x1a8] sm:$0xff] %v637
        %872 = vst [vmem:[%s201 + $0x1b0] sm:$0xff] %v776
        %873 = vst [vmem:[%s201 + $0x1b8] sm:$0xff] %v778
        %874 = vst [vmem:[%s201 + $0x1c0] sm:$0xff] %v641
        %875 = vst [vmem:[%s201 + $0x1c8] sm:$0xff] %v643
        %876 = vst [vmem:[%s201 + $0x1d0] sm:$0xff] %v782
        %877 = vst [vmem:[%s201 + $0x1d8] sm:$0xff] %v784
        %878 = vst [vmem:[%s201 + $0x1e0] sm:$0xff] %v645
        %879 = vst [vmem:[%s201 + $0x1e8] sm:$0xff] %v647
        %880 = vst [vmem:[%s201 + $0x1f0] sm:$0xff] %v786
        %881 = vst [vmem:[%s201 + $0x1f8] sm:$0xff] %v788
        %882 = vst [vmem:[%s201 + $0x200] sm:$0xff] %v651
        %883 = vst [vmem:[%s201 + $0x208] sm:$0xff] %v653
        %884 = vst [vmem:[%s201 + $0x210] sm:$0xff] %v792
        %885 = vst [vmem:[%s201 + $0x218] sm:$0xff] %v794
        %886 = vst [vmem:[%s201 + $0x220] sm:$0xff] %v655
        %887 = vst [vmem:[%s201 + $0x228] sm:$0xff] %v657
        %888 = vst [vmem:[%s201 + $0x230] sm:$0xff] %v796
        %889 = vst [vmem:[%s201 + $0x238] sm:$0xff] %v798
        %890 = vst [vmem:[%s201 + $0x240] sm:$0xff] %v661
        %891 = vst [vmem:[%s201 + $0x248] sm:$0xff] %v663
        %892 = vst [vmem:[%s201 + $0x250] sm:$0xff] %v802
        %893 = vst [vmem:[%s201 + $0x258] sm:$0xff] %v804
        %894 = vst [vmem:[%s201 + $0x260] sm:$0xff] %v665
        %895 = vst [vmem:[%s201 + $0x268] sm:$0xff] %v667
        %896 = vst [vmem:[%s201 + $0x270] sm:$0xff] %v806
        %897 = vst [vmem:[%s201 + $0x278] sm:$0xff] %v808
        %898 = vst [vmem:[%s201 + $0x280] sm:$0xff] %v671
        %899 = vst [vmem:[%s201 + $0x288] sm:$0xff] %v673
        %900 = vst [vmem:[%s201 + $0x290] sm:$0xff] %v812
        %901 = vst [vmem:[%s201 + $0x298] sm:$0xff] %v814
        %s902 = sand.u32 %s91, 1
        %s903 = scalar_lea.sflag [#allocation4], %s902
        %s904 = sand.u32 %s91, 1
        %s905 = smul.addr %s904, 672
        %s906 = scalar_lea.vmem [#allocation7], %s905
        // Predicated region
        $region37: #{tpu_custom_call.1} parent=27 // pred_check
          %p907 = pneg %p101
        $region38: #{tpu_custom_call.1} parent=27 // pred_check_branch
          %909 = sbr.rel (%p907) target = $region40
        $region39: #{tpu_custom_call.1} parent=27 // pred_region
          %s910 = smul.u32 4, %s25
          %s911 = ssub.s32 7, %s910
          %p912 = scmp.lt.s32.totalorder %s911, 4
          %s913 = scalar_select %p912, %s911, 4
          %s914 = smul.u32 2688, %s913
          %s916 = ssub.s32 10752, %s914
          %917 = vsyncadd %s903, %s916
          %p918 = scmp.ne.s32.totalorder 0, %s914
          %s919 = smul.addr %s24, 147
          %s920 = sadd.s32 %s910, %s919
          %s921 = smul.addr %s920, 128
          %s922 = scalar_lea.hbm %s2, %s921
          %s923 = smul.u32 %s913, 8
          %s924 = smul.u32 %s923, 21
          %s925 = sshll.u32 %s906, 4
          %s926 = int_to_ptr.vmem [resolvable:$true] %s925
          %s927 = sshll.u32 %s924, 4
          %931 = dma.vmem_to_hbm [thread:$0]  (%p918), %s926, %s927, %s922, %s903, 512, 896, %s923
        $region40: #{tpu_custom_call.1} parent=27 // pred_fallthru
          _
      $region28: #{tpu_custom_call.1} parent=5 // pred_fallthru
        _
      %p932 = scmp.le.s32.totalorder 2, %s15
      // Predicated region
      $region41: #{tpu_custom_call.1} parent=5 // pred_check
        %p933 = pneg %p932
      $region42: #{tpu_custom_call.1} parent=5 // pred_check_branch
        %935 = sbr.rel (%p933) target = $region44
      $region43: #{tpu_custom_call.1} parent=5 // pred_region
        %s936 = ssub.s32 %s15, 2
        // Predicated region
        $region45: #{tpu_custom_call.1} parent=43 // pred_check
          %p937 = pneg %p107
        $region46: #{tpu_custom_call.1} parent=43 // pred_check_branch
          %939 = sbr.rel (%p937) target = $region48
        $region47: #{tpu_custom_call.1} parent=43 // pred_region
          %s940 = sand.u32 %s92, 1
          %s941 = scalar_lea.sflag [#allocation4], %s940
          %s942 = sand.u32 %s92, 1
          %s943 = smul.addr %s942, 672
          %s944 = scalar_lea.vmem [#allocation7], %s943
          %945 = dma.done %s941, 10752
        $region48: #{tpu_custom_call.1} parent=43 // pred_fallthru
          _
      $region44: #{tpu_custom_call.1} parent=5 // pred_fallthru
        _
    $region6: #{tpu_custom_call.1} parent=1 // loop_footer
      %s19 = sadd.s32 1, %s15
    $region7: #{tpu_custom_call.1} parent=1 // loop_footer_branch
      %14 = sbr.rel target = $region3
    $region8: #{tpu_custom_call.1} parent=1 // loop_exit
      _
    %946 = vsyncpa [#allocation3], 1
    %s947 = scalar_lea.sflag [#allocation3], 1
    %948 = vsyncpa %s947, 1
    %949 = vsyncpa [#allocation6], 1
    %s950 = scalar_lea.sflag [#allocation6], 1
    %951 = vsyncpa %s950, 1
    %952 = vsyncpa [#allocation4], 1
    %s953 = scalar_lea.sflag [#allocation4], 1
    %954 = vsyncpa %s953, 1

</llo_original>
